<compile_context>
chip_gen: v5e
topology: v5e:2x2
jax: 0.10.0
libtpu: 0.0.40
codegen_flags: <defaults>
</compile_context>

<pallas_src>
import math

import jax
import jax.numpy as jnp
from jax.experimental import pallas as pl
from jax.experimental.pallas import tpu as pltpu

_SUBLANE = 8


def _round_up(x: int, m: int) -> int:
    return ((x + m - 1) // m) * m


def _vmem_capacity_bytes() -> int:
    """Physical VMEM per TensorCore; conservative (v7x) fallback."""
    try:
        return int(pltpu.get_tpu_info().vmem_capacity_bytes)
    except Exception:
        return 64 << 20


def _lens_kernel(fr_ref, fi_ref, lr_ref, li_ref, or_ref, oi_ref):
    # All refs are (TH, W) f32 tiles (batch dim squeezed on field/out).
    a = fr_ref[...]   # field real
    b = fi_ref[...]   # field imag
    c = lr_ref[...]   # lens real
    d = li_ref[...]   # lens imag
    or_ref[...] = a * c - b * d
    oi_ref[...] = a * d + b * c


def lens_forward(field_re: jax.Array, field_im: jax.Array,
                 lens_re: jax.Array, lens_im: jax.Array):
    """Apply the lens phase to a complex field given as (re, im) f32 planes.

    field_re/field_im: (B, H, W) float32
    lens_re/lens_im:   (H, W)    float32
    Returns (out_re, out_im), each (B, H, W) float32.
    """
    B, H, W = field_re.shape
    assert field_im.shape == (B, H, W)
    assert lens_re.shape == (H, W) and lens_im.shape == (H, W)

    capacity = _vmem_capacity_bytes()
    budget = int(0.6 * capacity)          # ~38 MiB on v7x, ~76 MiB on v5e/v6e

    # 6 f32 planes per grid step (field re/im, lens re/im, out re/im),
    # double-buffered => 48 bytes per (row, W) element.
    bytes_per_row = 6 * 2 * 4 * W
    max_rows = max(_SUBLANE, budget // bytes_per_row)

    # Row tile: VMEM-budget-driven, but keep >= 2 h-tiles when H permits so the
    # "parallel" h axis shards across both v7x TensorCores.
    th = min(max_rows, H)
    if H >= 2 * _SUBLANE:
        th = min(th, _round_up(pl.cdiv(H, 2), _SUBLANE))
    if th >= H:
        th = H                                            # block dim == full dim
    else:
        th = max(_SUBLANE, (th // _SUBLANE) * _SUBLANE)   # multiple of 8

    num_h = pl.cdiv(H, th)
    grid = (num_h, B)   # batch innermost -> lens tile stays VMEM-resident over B

    # Field/out blocks: batch squeezed, (TH, W) tile; last dim = full W (no pad).
    field_spec = pl.BlockSpec((pl.Squeezed(), th, W), lambda h, b: (b, h, 0))
    # Lens block ignores b -> not re-fetched across the batch loop.
    lens_spec = pl.BlockSpec((th, W), lambda h, b: (h, 0))

    working_set = 6 * 2 * 4 * th * W
    vmem_limit = int(min(max(working_set + (8 << 20), 32 << 20),
                         capacity - (8 << 20)))

    cost = pl.CostEstimate(
        flops=6 * B * H * W,
        transcendentals=0,
        bytes_accessed=4 * H * W * (4 * B + 2),   # 2B+2 reads + 2B writes, f32
    )

    out_re, out_im = pl.pallas_call(
        _lens_kernel,
        out_shape=(jax.ShapeDtypeStruct((B, H, W), jnp.float32),
                   jax.ShapeDtypeStruct((B, H, W), jnp.float32)),
        grid_spec=pltpu.PrefetchScalarGridSpec(
            num_scalar_prefetch=0,
            grid=grid,
            in_specs=[field_spec, field_spec, lens_spec, lens_spec],
            out_specs=[field_spec, field_spec],
        ),
        compiler_params=pltpu.CompilerParams(
            # h is sharded across cores; batch stays the innermost per-core loop
            # so the lens-residency trick holds.
            dimension_semantics=("parallel", "arbitrary"),
            vmem_limit_bytes=vmem_limit,
        ),
        cost_estimate=cost,
    )(field_re, field_im, lens_re, lens_im)

    return out_re, out_im


def make_lens_function(whole_dim: int, pixel_size: float,
                       focal_length: float, wave_lambda: float):
    """Deterministic constant construction, mirroring Lens.__init__.

    Returned planes are already in the exact layout the kernel consumes
    ((H, W) float32 re/im), so nothing is repacked per forward call.
    """
    temp = jnp.arange(-math.ceil((whole_dim - 1) / 2),
                      math.floor((whole_dim - 1) / 2) + 0.5)
    x = temp * pixel_size
    xx, yy = jnp.meshgrid(x, x)
    phase = (-math.pi / wave_lambda / focal_length) * (xx ** 2 + yy ** 2)
    # exp(i * phase) -> (cos, sin); torch casts to complex64 (f32 parts).
    lens_re = jnp.cos(phase).astype(jnp.float32)
    lens_im = jnp.sin(phase).astype(jnp.float32)
    return lens_re, lens_im


if __name__ == "__main__":
    pixel_size = 4e-6
    focal_length = 0.1
    wave_lambda = 532e-9

    # Small deterministic setups; second case exercises the ragged-H/W path.
    for whole_dim, batch in ((16, 2), (20, 1)):
        lens_re, lens_im = make_lens_function(whole_dim, pixel_size,
                                              focal_length, wave_lambda)

        key = jax.random.PRNGKey(0)
        k_re, k_im = jax.random.split(key)
        field_re = jax.random.normal(k_re, (batch, whole_dim, whole_dim),
                                     dtype=jnp.float32)
        field_im = jax.random.normal(k_im, (batch, whole_dim, whole_dim),
                                     dtype=jnp.float32)

        out_re, out_im = lens_forward(field_re, field_im, lens_re, lens_im)
        out_re = jax.block_until_ready(out_re)
        out_im = jax.block_until_ready(out_im)

        # Reference: plain-JAX complex multiply (same semantics as torch.mul).
        ref = (field_re + 1j * field_im) * (lens_re + 1j * lens_im)
        assert out_re.shape == (batch, whole_dim, whole_dim)
        assert jnp.allclose(out_re, jnp.real(ref), atol=1e-5)
        assert jnp.allclose(out_im, jnp.imag(ref), atol=1e-5)

    print("KERNEL_OK")
</pallas_src>

<mosaic_0001>
module attributes {stable_mosaic.version = 11 : i64} {
  func.func @_lens_kernel(%arg0: i32, %arg1: i32, %arg2: memref<1x8x16xf32, #tpu.memory_space<vmem>>, %arg3: memref<1x8x16xf32, #tpu.memory_space<vmem>>, %arg4: memref<8x16xf32, #tpu.memory_space<vmem>>, %arg5: memref<8x16xf32, #tpu.memory_space<vmem>>, %arg6: memref<1x8x16xf32, #tpu.memory_space<vmem>>, %arg7: memref<1x8x16xf32, #tpu.memory_space<vmem>>) attributes {dimension_semantics = [#tpu.dimension_semantics<parallel>, #tpu.dimension_semantics<arbitrary>], iteration_bounds = array<i64: 2, 2>, scalar_prefetch = 0 : i64, scratch_operands = 0 : i64, tpu.core_type = #tpu.core_type<tc>, window_params = [{transform_indices = @transform_0, window_bounds = array<i64: 1, 8, 16>}, {transform_indices = @transform_1, window_bounds = array<i64: 1, 8, 16>}, {transform_indices = @transform_2, window_bounds = array<i64: 8, 16>}, {transform_indices = @transform_3, window_bounds = array<i64: 8, 16>}, {transform_indices = @transform_4, window_bounds = array<i64: 1, 8, 16>}, {transform_indices = @transform_5, window_bounds = array<i64: 1, 8, 16>}]} {
    %c0 = arith.constant 0 : index
    %c0_0 = arith.constant 0 : index
    %c0_1 = arith.constant 0 : index
    %0 = vector.load %arg2[%c0, %c0_0, %c0_1] : memref<1x8x16xf32, #tpu.memory_space<vmem>>, vector<1x8x16xf32>
    %1 = vector.shape_cast %0 : vector<1x8x16xf32> to vector<8x16xf32>
    %c0_2 = arith.constant 0 : index
    %c0_3 = arith.constant 0 : index
    %c0_4 = arith.constant 0 : index
    %2 = vector.load %arg3[%c0_2, %c0_3, %c0_4] : memref<1x8x16xf32, #tpu.memory_space<vmem>>, vector<1x8x16xf32>
    %3 = vector.shape_cast %2 : vector<1x8x16xf32> to vector<8x16xf32>
    %c0_5 = arith.constant 0 : index
    %c0_6 = arith.constant 0 : index
    %4 = vector.load %arg4[%c0_5, %c0_6] : memref<8x16xf32, #tpu.memory_space<vmem>>, vector<8x16xf32>
    %c0_7 = arith.constant 0 : index
    %c0_8 = arith.constant 0 : index
    %5 = vector.load %arg5[%c0_7, %c0_8] : memref<8x16xf32, #tpu.memory_space<vmem>>, vector<8x16xf32>
    %6 = arith.mulf %1, %4 : vector<8x16xf32>
    %7 = arith.mulf %3, %5 : vector<8x16xf32>
    %8 = arith.subf %6, %7 : vector<8x16xf32>
    %c0_9 = arith.constant 0 : index
    %c0_10 = arith.constant 0 : index
    %c0_11 = arith.constant 0 : index
    %9 = vector.load %arg6[%c0_9, %c0_10, %c0_11] : memref<1x8x16xf32, #tpu.memory_space<vmem>>, vector<1x8x16xf32>
    %10 = vector.shape_cast %9 : vector<1x8x16xf32> to vector<8x16xf32>
    %11 = vector.shape_cast %8 : vector<8x16xf32> to vector<1x8x16xf32>
    tpu.vector_store %arg6[%c0_9, %c0_10, %c0_11], %11 {strides = array<i32>} : memref<1x8x16xf32, #tpu.memory_space<vmem>>, vector<1x8x16xf32>,
    %12 = arith.mulf %1, %5 : vector<8x16xf32>
    %13 = arith.mulf %3, %4 : vector<8x16xf32>
    %14 = arith.addf %12, %13 : vector<8x16xf32>
    %c0_12 = arith.constant 0 : index
    %c0_13 = arith.constant 0 : index
    %c0_14 = arith.constant 0 : index
    %15 = vector.load %arg7[%c0_12, %c0_13, %c0_14] : memref<1x8x16xf32, #tpu.memory_space<vmem>>, vector<1x8x16xf32>
    %16 = vector.shape_cast %15 : vector<1x8x16xf32> to vector<8x16xf32>
    %17 = vector.shape_cast %14 : vector<8x16xf32> to vector<1x8x16xf32>
    tpu.vector_store %arg7[%c0_12, %c0_13, %c0_14], %17 {strides = array<i32>} : memref<1x8x16xf32, #tpu.memory_space<vmem>>, vector<1x8x16xf32>,
    return
  }
  func.func @transform_0(%arg0: i32, %arg1: i32) -> (i32, i32, i32) {
    %c0_i32 = arith.constant 0 : i32
    %c0_i32_0 = arith.constant 0 : i32
    return %arg1, %arg0, %c0_i32 : i32, i32, i32
  }
  func.func @transform_1(%arg0: i32, %arg1: i32) -> (i32, i32, i32) {
    %c0_i32 = arith.constant 0 : i32
    %c0_i32_0 = arith.constant 0 : i32
    return %arg1, %arg0, %c0_i32 : i32, i32, i32
  }
  func.func @transform_2(%arg0: i32, %arg1: i32) -> (i32, i32) {
    %c0_i32 = arith.constant 0 : i32
    %c0_i32_0 = arith.constant 0 : i32
    return %arg0, %c0_i32 : i32, i32
  }
  func.func @transform_3(%arg0: i32, %arg1: i32) -> (i32, i32) {
    %c0_i32 = arith.constant 0 : i32
    %c0_i32_0 = arith.constant 0 : i32
    return %arg0, %c0_i32 : i32, i32
  }
  func.func @transform_4(%arg0: i32, %arg1: i32) -> (i32, i32, i32) {
    %c0_i32 = arith.constant 0 : i32
    %c0_i32_0 = arith.constant 0 : i32
    return %arg1, %arg0, %c0_i32 : i32, i32, i32
  }
  func.func @transform_5(%arg0: i32, %arg1: i32) -> (i32, i32, i32) {
    %c0_i32 = arith.constant 0 : i32
    %c0_i32_0 = arith.constant 0 : i32
    return %arg1, %arg0, %c0_i32 : i32, i32, i32
  }
}

</mosaic_0001>

<llo_original>
// kernel: tpu_custom_call.1
$region0: #{tpu_custom_call.1}
  #allocation0 [shape = 'u32[]', space=smem, size = 0x4, offset = 0x4, fixed_abs, tag = 'smem constant byte address 0x4 - core index']
  #allocation1 [shape = 'u32[72,128]{1,0:T(1,128)}', space=vmem, size = 0x9000, scoped, tag = 'internal scratch']
  %s0 = inlined_call_operand.hbm [shape: f32[2,16,16], index: 0, kind: input, shape index: {}]
  %s1 = inlined_call_operand.hbm [shape: f32[2,16,16], index: 1, kind: input, shape index: {}]
  %s2 = inlined_call_operand.hbm [shape: f32[16,16], index: 2, kind: input, shape index: {}]
  %s3 = inlined_call_operand.hbm [shape: f32[16,16], index: 3, kind: input, shape index: {}]
  %s4 = inlined_call_operand.hbm [shape: f32[2,16,16], index: 4, kind: output, shape index: {0}]
  %s5 = inlined_call_operand.hbm [shape: f32[2,16,16], index: 5, kind: output, shape index: {1}]
  %6 = xla_tuple %s4, %s5
  %s7 = sld [smem:[#allocation0]]
  $region73: #{tpu_custom_call.1} parent=0
    _
  %s9 = ssub.s32 1, %s7
  %s10 = scalar_select 0, %s9, %s7
  $region1: #{tpu_custom_call.1} parent=0
    #allocation2 [shape = 'u8[8192]{0}', space=vmem, size = 0x2000, scoped, tag = 'input window, operand 0']
    #allocation3 [shape = 's32[2]{0}', space=sflag, size = 0x8, scoped, tag = 'scoped memory for tpu_custom_call.1']
    #allocation4 [shape = 's32[2]{0}', space=sflag, size = 0x8, scoped, tag = 'scoped memory for tpu_custom_call.1']
    #allocation5 [shape = 'u8[8192]{0}', space=vmem, size = 0x2000, scoped, tag = 'input window, operand 1']
    #allocation6 [shape = 's32[2]{0}', space=sflag, size = 0x8, scoped, tag = 'scoped memory for tpu_custom_call.1']
    #allocation7 [shape = 'u8[8192]{0}', space=vmem, size = 0x2000, scoped, tag = 'input window, operand 2']
    #allocation8 [shape = 'u8[8192]{0}', space=vmem, size = 0x2000, scoped, tag = 'input window, operand 3']
    #allocation9 [shape = 's32[2]{0}', space=sflag, size = 0x8, scoped, tag = 'scoped memory for tpu_custom_call.1']
    #allocation10 [shape = 'u8[8192]{0}', space=vmem, size = 0x2000, scoped, tag = 'output window, operand 0']
    #allocation11 [shape = 'u8[8192]{0}', space=vmem, size = 0x2000, scoped, tag = 'output window, operand 1']
    #allocation12 [shape = 's32[2]{0}', space=sflag, size = 0x8, scoped, tag = 'scoped memory for tpu_custom_call.1']
    %11 = vsyncpa [#allocation3], 0
    %s12 = scalar_lea.sflag [#allocation3], 1
    %13 = vsyncpa %s12, 0
    %14 = vsyncpa [#allocation6], 0
    %s15 = scalar_lea.sflag [#allocation6], 1
    %16 = vsyncpa %s15, 0
    %17 = vsyncpa [#allocation9], 0
    %s18 = scalar_lea.sflag [#allocation9], 1
    %19 = vsyncpa %s18, 0
    %20 = vsyncpa [#allocation4], 0
    %s21 = scalar_lea.sflag [#allocation4], 1
    %22 = vsyncpa %s21, 0
    %23 = vsyncpa [#allocation12], 0
    %s24 = scalar_lea.sflag [#allocation12], 1
    %25 = vsyncpa %s24, 0
    loop: start=0, step=1, limit=6
    $region2: #{tpu_custom_call.1} parent=1 // loop_pre_header
      _
    $region3: #{tpu_custom_call.1} parent=1 // loop_header
      %s27 = sphi 0, %s31
      %p28 = scmp.ge.s32.totalorder %s27, 6
      %s34 = sphi 0, %s46
      %s35 = sphi 0, %s42
      %s36 = sphi 0, %s34
      %s37 = sphi 0, %s35
      %s38 = sphi 0, %s36
      %s39 = sphi 0, %s37
      %s51 = sphi 0, %s53
      %s54 = sphi 0, %s51
      %s55 = sphi 0, %s54
      %s71 = sphi 0, %s55
      %s79 = sphi 0, %s81
      %s82 = sphi 0, %s79
      %s83 = sphi 0, %s82
      %s99 = sphi 0, %s83
      %s105 = sphi 0, %s107
      %s108 = sphi 0, %s105
      %s109 = sphi 0, %s108
      %s125 = sphi 0, %s109
      %s131 = sphi 0, %s133
      %s134 = sphi 0, %s131
      %s135 = sphi 0, %s134
      %s151 = sphi 0, %s135
      %s159 = sphi 0, %s161
      %s162 = sphi 0, %s159
      %s163 = sphi 0, %s162
      %s179 = sphi 0, %s163
      %s187 = sphi 0, %s189
      %s190 = sphi 0, %s187
      %s191 = sphi 0, %s190
      %s207 = sphi 0, %s191
    $region4: #{tpu_custom_call.1} parent=1 // loop_header_branch
      %30 = sbr.rel (%p28) target = $region8
    $region5: #{tpu_custom_call.1} parent=1 // loop_body
      %s32 = ssub.s32 %s27, 1
      %s33 = ssub.s32 %s27, 2
      %s40 = sadd.s32 1, %s35
      %p41 = scmp.ge.s32.totalorder %s40, 2
      %s42 = scalar_select %p41, 0, %s40
      %s43 = sadd.s32 1, %s34
      %s44 = scalar_select %p41, %s43, %s34
      %p45 = scmp.ge.s32.totalorder %s44, 2
      %s46 = scalar_select %p45, 0, %s44
      %s47 = ssub.s32 %s35, %s42
      %s48 = ssub.s32 %s34, %s46
      %s49 = sor.u32 %s47, %s48
      %p50 = scmp.eq.s32.totalorder %s49, 0
      %s52 = sadd.s32 %s51, 1
      %s53 = scalar_select %p50, %s51, %s52
      %p56 = pneg %p50
      %p57 = scmp.eq.s32.totalorder %s27, 3
      %p58 = por %p56, %p57
      %p59 = scmp.ne.s32.totalorder %s51, %s54
      %p60 = scmp.eq.s32.totalorder %s27, 0
      %p61 = por %p59, %p60
      %p62 = scmp.ne.s32.totalorder %s51, %s54
      %p63 = scmp.eq.s32.totalorder %s32, 3
      %p64 = por %p62, %p63
      %p65 = scmp.ne.s32.totalorder %s54, %s55
      %p66 = scmp.eq.s32.totalorder %s32, 0
      %p67 = por %p65, %p66
      %p68 = scmp.ne.s32.totalorder %s54, %s55
      %p69 = scmp.eq.s32.totalorder %s33, 3
      %p70 = por %p68, %p69
      %p72 = scmp.ne.s32.totalorder %s55, %s71
      %p73 = scmp.eq.s32.totalorder %s33, 0
      %p74 = por %p72, %p73
      %s75 = ssub.s32 %s35, %s42
      %s76 = ssub.s32 %s34, %s46
      %s77 = sor.u32 %s75, %s76
      %p78 = scmp.eq.s32.totalorder %s77, 0
      %s80 = sadd.s32 %s79, 1
      %s81 = scalar_select %p78, %s79, %s80
      %p84 = pneg %p78
      %p85 = scmp.eq.s32.totalorder %s27, 3
      %p86 = por %p84, %p85
      %p87 = scmp.ne.s32.totalorder %s79, %s82
      %p88 = scmp.eq.s32.totalorder %s27, 0
      %p89 = por %p87, %p88
      %p90 = scmp.ne.s32.totalorder %s79, %s82
      %p91 = scmp.eq.s32.totalorder %s32, 3
      %p92 = por %p90, %p91
      %p93 = scmp.ne.s32.totalorder %s82, %s83
      %p94 = scmp.eq.s32.totalorder %s32, 0
      %p95 = por %p93, %p94
      %p96 = scmp.ne.s32.totalorder %s82, %s83
      %p97 = scmp.eq.s32.totalorder %s33, 3
      %p98 = por %p96, %p97
      %p100 = scmp.ne.s32.totalorder %s83, %s99
      %p101 = scmp.eq.s32.totalorder %s33, 0
      %p102 = por %p100, %p101
      %s103 = ssub.s32 %s34, %s46
      %p104 = scmp.eq.s32.totalorder %s103, 0
      %s106 = sadd.s32 %s105, 1
      %s107 = scalar_select %p104, %s105, %s106
      %p110 = pneg %p104
      %p111 = scmp.eq.s32.totalorder %s27, 3
      %p112 = por %p110, %p111
      %p113 = scmp.ne.s32.totalorder %s105, %s108
      %p114 = scmp.eq.s32.totalorder %s27, 0
      %p115 = por %p113, %p114
      %p116 = scmp.ne.s32.totalorder %s105, %s108
      %p117 = scmp.eq.s32.totalorder %s32, 3
      %p118 = por %p116, %p117
      %p119 = scmp.ne.s32.totalorder %s108, %s109
      %p120 = scmp.eq.s32.totalorder %s32, 0
      %p121 = por %p119, %p120
      %p122 = scmp.ne.s32.totalorder %s108, %s109
      %p123 = scmp.eq.s32.totalorder %s33, 3
      %p124 = por %p122, %p123
      %p126 = scmp.ne.s32.totalorder %s109, %s125
      %p127 = scmp.eq.s32.totalorder %s33, 0
      %p128 = por %p126, %p127
      %s129 = ssub.s32 %s34, %s46
      %p130 = scmp.eq.s32.totalorder %s129, 0
      %s132 = sadd.s32 %s131, 1
      %s133 = scalar_select %p130, %s131, %s132
      %p136 = pneg %p130
      %p137 = scmp.eq.s32.totalorder %s27, 3
      %p138 = por %p136, %p137
      %p139 = scmp.ne.s32.totalorder %s131, %s134
      %p140 = scmp.eq.s32.totalorder %s27, 0
      %p141 = por %p139, %p140
      %p142 = scmp.ne.s32.totalorder %s131, %s134
      %p143 = scmp.eq.s32.totalorder %s32, 3
      %p144 = por %p142, %p143
      %p145 = scmp.ne.s32.totalorder %s134, %s135
      %p146 = scmp.eq.s32.totalorder %s32, 0
      %p147 = por %p145, %p146
      %p148 = scmp.ne.s32.totalorder %s134, %s135
      %p149 = scmp.eq.s32.totalorder %s33, 3
      %p150 = por %p148, %p149
      %p152 = scmp.ne.s32.totalorder %s135, %s151
      %p153 = scmp.eq.s32.totalorder %s33, 0
      %p154 = por %p152, %p153
      %s155 = ssub.s32 %s35, %s42
      %s156 = ssub.s32 %s34, %s46
      %s157 = sor.u32 %s155, %s156
      %p158 = scmp.eq.s32.totalorder %s157, 0
      %s160 = sadd.s32 %s159, 1
      %s161 = scalar_select %p158, %s159, %s160
      %p164 = pneg %p158
      %p165 = scmp.eq.s32.totalorder %s27, 3
      %p166 = por %p164, %p165
      %p167 = scmp.ne.s32.totalorder %s159, %s162
      %p168 = scmp.eq.s32.totalorder %s27, 0
      %p169 = por %p167, %p168
      %p170 = scmp.ne.s32.totalorder %s159, %s162
      %p171 = scmp.eq.s32.totalorder %s32, 3
      %p172 = por %p170, %p171
      %p173 = scmp.ne.s32.totalorder %s162, %s163
      %p174 = scmp.eq.s32.totalorder %s32, 0
      %p175 = por %p173, %p174
      %p176 = scmp.ne.s32.totalorder %s162, %s163
      %p177 = scmp.eq.s32.totalorder %s33, 3
      %p178 = por %p176, %p177
      %p180 = scmp.ne.s32.totalorder %s163, %s179
      %p181 = scmp.eq.s32.totalorder %s33, 0
      %p182 = por %p180, %p181
      %s183 = ssub.s32 %s35, %s42
      %s184 = ssub.s32 %s34, %s46
      %s185 = sor.u32 %s183, %s184
      %p186 = scmp.eq.s32.totalorder %s185, 0
      %s188 = sadd.s32 %s187, 1
      %s189 = scalar_select %p186, %s187, %s188
      %p192 = pneg %p186
      %p193 = scmp.eq.s32.totalorder %s27, 3
      %p194 = por %p192, %p193
      %p195 = scmp.ne.s32.totalorder %s187, %s190
      %p196 = scmp.eq.s32.totalorder %s27, 0
      %p197 = por %p195, %p196
      %p198 = scmp.ne.s32.totalorder %s187, %s190
      %p199 = scmp.eq.s32.totalorder %s32, 3
      %p200 = por %p198, %p199
      %p201 = scmp.ne.s32.totalorder %s190, %s191
      %p202 = scmp.eq.s32.totalorder %s32, 0
      %p203 = por %p201, %p202
      %p204 = scmp.ne.s32.totalorder %s190, %s191
      %p205 = scmp.eq.s32.totalorder %s33, 3
      %p206 = por %p204, %p205
      %p208 = scmp.ne.s32.totalorder %s191, %s207
      %p209 = scmp.eq.s32.totalorder %s33, 0
      %p210 = por %p208, %p209
      %p211 = scmp.le.s32.totalorder 1, %s27
      %p212 = scmp.lt.s32.totalorder %s27, 5
      %p213 = pnand %p211, %p212
      %p214 = pneg %p213
      // Predicated region
      $region9: #{tpu_custom_call.1} parent=5 // pred_check
        _
      $region10: #{tpu_custom_call.1} parent=5 // pred_check_branch
        %216 = sbr.rel (%p213) target = $region12
      $region11: #{tpu_custom_call.1} parent=5 // pred_region
        %s217 = ssub.s32 %s27, 1
      $region12: #{tpu_custom_call.1} parent=5 // pred_fallthru
        _
      %p218 = scmp.lt.s32.totalorder %s27, 4
      // Predicated region
      $region13: #{tpu_custom_call.1} parent=5 // pred_check
        %p219 = pneg %p218
      $region14: #{tpu_custom_call.1} parent=5 // pred_check_branch
        %221 = sbr.rel (%p219) target = $region16
      $region15: #{tpu_custom_call.1} parent=5 // pred_region
        // Predicated region
        $region17: #{tpu_custom_call.1} parent=15 // pred_check
          %p222 = pneg %p61
        $region18: #{tpu_custom_call.1} parent=15 // pred_check_branch
          %224 = sbr.rel (%p222) target = $region20
        $region19: #{tpu_custom_call.1} parent=15 // pred_region
          %s225 = sand.u32 %s51, 1
          %s226 = scalar_lea.sflag [#allocation3], %s225
          %s227 = sand.u32 %s51, 1
          %s228 = smul.addr %s227, 8
          %s229 = scalar_lea.vmem [#allocation2], %s228
          %231 = vsyncadd %s226, 0
          %s232 = smul.addr %s35, 2
          %s233 = sadd.s32 %s34, %s232
          %s234 = smul.addr %s233, 8
          %s235 = scalar_lea.hbm %s0, %s234
          %s237 = sshll.u32 %s235, 4
          %s238 = int_to_ptr.hbm [resolvable:$true] %s237
          %s239 = sshll.u32 %s229, 4
          %s240 = int_to_ptr.vmem [resolvable:$true] %s239
          %242 = dma.hbm_to_vmem [thread:$0]  %s238, 128, %s240, %s226
        $region20: #{tpu_custom_call.1} parent=15 // pred_fallthru
          _
        // Predicated region
        $region21: #{tpu_custom_call.1} parent=15 // pred_check
          %p243 = pneg %p89
        $region22: #{tpu_custom_call.1} parent=15 // pred_check_branch
          %245 = sbr.rel (%p243) target = $region24
        $region23: #{tpu_custom_call.1} parent=15 // pred_region
          %s246 = sand.u32 %s27, 1
          %s247 = scalar_lea.sflag [#allocation6], %s246
          %s248 = sand.u32 %s79, 1
          %s249 = smul.addr %s248, 8
          %s250 = scalar_lea.vmem [#allocation5], %s249
          %252 = vsyncadd %s247, 0
          %s253 = smul.addr %s35, 2
          %s254 = sadd.s32 %s34, %s253
          %s255 = smul.addr %s254, 8
          %s256 = scalar_lea.hbm %s1, %s255
          %s258 = sshll.u32 %s256, 4
          %s259 = int_to_ptr.hbm [resolvable:$true] %s258
          %s260 = sshll.u32 %s250, 4
          %s261 = int_to_ptr.vmem [resolvable:$true] %s260
          %263 = dma.hbm_to_vmem [thread:$0]  %s259, 128, %s261, %s247
        $region24: #{tpu_custom_call.1} parent=15 // pred_fallthru
          _
        // Predicated region
        $region25: #{tpu_custom_call.1} parent=15 // pred_check
          %p264 = pneg %p115
        $region26: #{tpu_custom_call.1} parent=15 // pred_check_branch
          %266 = sbr.rel (%p264) target = $region28
        $region27: #{tpu_custom_call.1} parent=15 // pred_region
          %s267 = sand.u32 %s27, 1
          %s268 = scalar_lea.sflag [#allocation6], %s267
          %s269 = sand.u32 %s105, 1
          %s270 = smul.addr %s269, 8
          %s271 = scalar_lea.vmem [#allocation7], %s270
          %273 = vsyncadd %s268, 0
          %s274 = smul.addr %s34, 8
          %s275 = scalar_lea.hbm %s2, %s274
          %s277 = sshll.u32 %s275, 4
          %s278 = int_to_ptr.hbm [resolvable:$true] %s277
          %s279 = sshll.u32 %s271, 4
          %s280 = int_to_ptr.vmem [resolvable:$true] %s279
          %282 = dma.hbm_to_vmem [thread:$0]  %s278, 128, %s280, %s268
        $region28: #{tpu_custom_call.1} parent=15 // pred_fallthru
          _
        // Predicated region
        $region29: #{tpu_custom_call.1} parent=15 // pred_check
          %p283 = pneg %p141
        $region30: #{tpu_custom_call.1} parent=15 // pred_check_branch
          %285 = sbr.rel (%p283) target = $region32
        $region31: #{tpu_custom_call.1} parent=15 // pred_region
          %s286 = sand.u32 %s131, 1
          %s287 = scalar_lea.sflag [#allocation9], %s286
          %s288 = sand.u32 %s131, 1
          %s289 = smul.addr %s288, 8
          %s290 = scalar_lea.vmem [#allocation8], %s289
          %292 = vsyncadd %s287, 0
          %s293 = smul.addr %s34, 8
          %s294 = scalar_lea.hbm %s3, %s293
          %s296 = sshll.u32 %s294, 4
          %s297 = int_to_ptr.hbm [resolvable:$true] %s296
          %s298 = sshll.u32 %s290, 4
          %s299 = int_to_ptr.vmem [resolvable:$true] %s298
          %301 = dma.hbm_to_vmem [thread:$0]  %s297, 128, %s299, %s287
        $region32: #{tpu_custom_call.1} parent=15 // pred_fallthru
          _
      $region16: #{tpu_custom_call.1} parent=5 // pred_fallthru
        _
      %p302 = scmp.le.s32.totalorder 1, %s27
      %p303 = scmp.lt.s32.totalorder %s27, 5
      %p304 = pnand %p302, %p303
      %p305 = pneg %p304
      // Predicated region
      $region33: #{tpu_custom_call.1} parent=5 // pred_check
        _
      $region34: #{tpu_custom_call.1} parent=5 // pred_check_branch
        %307 = sbr.rel (%p304) target = $region36
      $region35: #{tpu_custom_call.1} parent=5 // pred_region
        %s308 = ssub.s32 %s27, 1
        %s309 = sand.u32 %s54, 1
        %s310 = scalar_lea.sflag [#allocation3], %s309
        %s311 = sand.u32 %s54, 1
        %s312 = smul.addr %s311, 8
        %s313 = scalar_lea.vmem [#allocation2], %s312
        // Predicated region
        $region37: #{tpu_custom_call.1} parent=35 // pred_check
          %p314 = pneg %p67
        $region38: #{tpu_custom_call.1} parent=35 // pred_check_branch
          %316 = sbr.rel (%p314) target = $region40
        $region39: #{tpu_custom_call.1} parent=35 // pred_region
          %318 = dma.done %s310, 128
        $region40: #{tpu_custom_call.1} parent=35 // pred_fallthru
          _
        %s319 = sand.u32 %s32, 1
        %s320 = scalar_lea.sflag [#allocation6], %s319
        %s321 = sand.u32 %s82, 1
        %s322 = smul.addr %s321, 8
        %s323 = scalar_lea.vmem [#allocation5], %s322
        // Predicated region
        $region41: #{tpu_custom_call.1} parent=35 // pred_check
          %p324 = pneg %p95
        $region42: #{tpu_custom_call.1} parent=35 // pred_check_branch
          %326 = sbr.rel (%p324) target = $region44
        $region43: #{tpu_custom_call.1} parent=35 // pred_region
          %328 = dma.done %s320, 128
        $region44: #{tpu_custom_call.1} parent=35 // pred_fallthru
          _
        %s329 = sand.u32 %s32, 1
        %s330 = scalar_lea.sflag [#allocation6], %s329
        %s331 = sand.u32 %s108, 1
        %s332 = smul.addr %s331, 8
        %s333 = scalar_lea.vmem [#allocation7], %s332
        // Predicated region
        $region45: #{tpu_custom_call.1} parent=35 // pred_check
          %p334 = pneg %p121
        $region46: #{tpu_custom_call.1} parent=35 // pred_check_branch
          %336 = sbr.rel (%p334) target = $region48
        $region47: #{tpu_custom_call.1} parent=35 // pred_region
          %338 = dma.done %s330, 128
        $region48: #{tpu_custom_call.1} parent=35 // pred_fallthru
          _
        %s339 = sand.u32 %s134, 1
        %s340 = scalar_lea.sflag [#allocation9], %s339
        %s341 = sand.u32 %s134, 1
        %s342 = smul.addr %s341, 8
        %s343 = scalar_lea.vmem [#allocation8], %s342
        // Predicated region
        $region49: #{tpu_custom_call.1} parent=35 // pred_check
          %p344 = pneg %p147
        $region50: #{tpu_custom_call.1} parent=35 // pred_check_branch
          %346 = sbr.rel (%p344) target = $region52
        $region51: #{tpu_custom_call.1} parent=35 // pred_region
          %348 = dma.done %s340, 128
        $region52: #{tpu_custom_call.1} parent=35 // pred_fallthru
          _
        %s349 = sand.u32 %s54, 1
        %s350 = scalar_lea.sflag [#allocation3], %s349
        %s351 = sand.u32 %s54, 1
        %s352 = smul.addr %s351, 8
        %s353 = scalar_lea.vmem [#allocation2], %s352
        %p354 = pneg %p67
        %p355 = pneg %p64
        %s356 = sand.u32 %s32, 1
        %s357 = scalar_lea.sflag [#allocation6], %s356
        %s358 = sand.u32 %s82, 1
        %s359 = smul.addr %s358, 8
        %s360 = scalar_lea.vmem [#allocation5], %s359
        %p361 = pneg %p95
        %p362 = pneg %p92
        %s363 = sand.u32 %s32, 1
        %s364 = scalar_lea.sflag [#allocation6], %s363
        %s365 = sand.u32 %s108, 1
        %s366 = smul.addr %s365, 8
        %s367 = scalar_lea.vmem [#allocation7], %s366
        %p368 = pneg %p121
        %p369 = pneg %p118
        %s370 = sand.u32 %s134, 1
        %s371 = scalar_lea.sflag [#allocation9], %s370
        %s372 = sand.u32 %s134, 1
        %s373 = smul.addr %s372, 8
        %s374 = scalar_lea.vmem [#allocation8], %s373
        %p375 = pneg %p147
        %p376 = pneg %p144
        %p377 = pneg %p175
        %p378 = pneg %p172
        %s379 = sand.u32 %s162, 1
        %s380 = scalar_lea.sflag [#allocation4], %s379
        %s381 = sand.u32 %s162, 1
        %s382 = smul.addr %s381, 8
        %s383 = scalar_lea.vmem [#allocation10], %s382
        %p384 = pneg %p203
        %p385 = pneg %p200
        %s386 = sand.u32 %s190, 1
        %s387 = scalar_lea.sflag [#allocation12], %s386
        %s388 = sand.u32 %s190, 1
        %s389 = smul.addr %s388, 8
        %s390 = scalar_lea.vmem [#allocation11], %s389
        %v391 = vld [vmem:[%s313] sm:$0xff]
        %v392 = vld [vmem:[%s323] sm:$0xff]
        %v393 = vld [vmem:[%s333] sm:$0xff]
        %v394 = vld [vmem:[%s343] sm:$0xff]
        %v395 = vmul.f32 %v391, %v393
        %v396 = vmul.f32 %v392, %v394
        %v397 = vsub.f32 %v395, %v396
        %vm398 = vcmask 130048
        %399 = vst.msk [vmem:[%s383] sm:$0xff] %vm398, %v397
        %v400 = vmul.f32 %v391, %v394
        %v401 = vmul.f32 %v392, %v393
        %v402 = vadd.f32 %v400, %v401
        %403 = vst.msk [vmem:[%s390] sm:$0xff] %vm398, %v402
        %s404 = sand.u32 %s162, 1
        %s405 = scalar_lea.sflag [#allocation4], %s404
        %s406 = sand.u32 %s162, 1
        %s407 = smul.addr %s406, 8
        %s408 = scalar_lea.vmem [#allocation10], %s407
        %s409 = sand.u32 %s190, 1
        %s410 = scalar_lea.sflag [#allocation12], %s409
        %s411 = sand.u32 %s190, 1
        %s412 = smul.addr %s411, 8
        %s413 = scalar_lea.vmem [#allocation11], %s412
        // Predicated region
        $region53: #{tpu_custom_call.1} parent=35 // pred_check
          %p414 = pneg %p172
        $region54: #{tpu_custom_call.1} parent=35 // pred_check_branch
          %416 = sbr.rel (%p414) target = $region56
        $region55: #{tpu_custom_call.1} parent=35 // pred_region
          %418 = vsyncadd %s405, 0
          %s419 = smul.addr %s37, 2
          %s420 = sadd.s32 %s36, %s419
          %s421 = smul.addr %s420, 8
          %s422 = scalar_lea.hbm %s4, %s421
          %s424 = sshll.u32 %s408, 4
          %s425 = int_to_ptr.vmem [resolvable:$true] %s424
          %s426 = sshll.u32 %s422, 4
          %s427 = int_to_ptr.hbm [resolvable:$true] %s426
          %429 = dma.vmem_to_hbm [thread:$0]  %s425, 128, %s427, %s405
        $region56: #{tpu_custom_call.1} parent=35 // pred_fallthru
          _
        // Predicated region
        $region57: #{tpu_custom_call.1} parent=35 // pred_check
          %p430 = pneg %p200
        $region58: #{tpu_custom_call.1} parent=35 // pred_check_branch
          %432 = sbr.rel (%p430) target = $region60
        $region59: #{tpu_custom_call.1} parent=35 // pred_region
          %434 = vsyncadd %s410, 0
          %s435 = smul.addr %s37, 2
          %s436 = sadd.s32 %s36, %s435
          %s437 = smul.addr %s436, 8
          %s438 = scalar_lea.hbm %s5, %s437
          %s440 = sshll.u32 %s413, 4
          %s441 = int_to_ptr.vmem [resolvable:$true] %s440
          %s442 = sshll.u32 %s438, 4
          %s443 = int_to_ptr.hbm [resolvable:$true] %s442
          %445 = dma.vmem_to_hbm [thread:$0]  %s441, 128, %s443, %s410
        $region60: #{tpu_custom_call.1} parent=35 // pred_fallthru
          _
      $region36: #{tpu_custom_call.1} parent=5 // pred_fallthru
        _
      %p446 = scmp.le.s32.totalorder 2, %s27
      // Predicated region
      $region61: #{tpu_custom_call.1} parent=5 // pred_check
        %p447 = pneg %p446
      $region62: #{tpu_custom_call.1} parent=5 // pred_check_branch
        %449 = sbr.rel (%p447) target = $region64
      $region63: #{tpu_custom_call.1} parent=5 // pred_region
        %s450 = ssub.s32 %s27, 2
        // Predicated region
        $region65: #{tpu_custom_call.1} parent=63 // pred_check
          %p451 = pneg %p178
        $region66: #{tpu_custom_call.1} parent=63 // pred_check_branch
          %453 = sbr.rel (%p451) target = $region68
        $region67: #{tpu_custom_call.1} parent=63 // pred_region
          %s454 = sand.u32 %s163, 1
          %s455 = scalar_lea.sflag [#allocation4], %s454
          %s456 = sand.u32 %s163, 1
          %s457 = smul.addr %s456, 8
          %s458 = scalar_lea.vmem [#allocation10], %s457
          %460 = dma.done %s455, 128
        $region68: #{tpu_custom_call.1} parent=63 // pred_fallthru
          _
        // Predicated region
        $region69: #{tpu_custom_call.1} parent=63 // pred_check
          %p461 = pneg %p206
        $region70: #{tpu_custom_call.1} parent=63 // pred_check_branch
          %463 = sbr.rel (%p461) target = $region72
        $region71: #{tpu_custom_call.1} parent=63 // pred_region
          %s464 = sand.u32 %s191, 1
          %s465 = scalar_lea.sflag [#allocation12], %s464
          %s466 = sand.u32 %s191, 1
          %s467 = smul.addr %s466, 8
          %s468 = scalar_lea.vmem [#allocation11], %s467
          %470 = dma.done %s465, 128
        $region72: #{tpu_custom_call.1} parent=63 // pred_fallthru
          _
      $region64: #{tpu_custom_call.1} parent=5 // pred_fallthru
        _
    $region6: #{tpu_custom_call.1} parent=1 // loop_footer
      %s31 = sadd.s32 1, %s27
    $region7: #{tpu_custom_call.1} parent=1 // loop_footer_branch
      %26 = sbr.rel target = $region3
    $region8: #{tpu_custom_call.1} parent=1 // loop_exit
      _
    %471 = vsyncpa [#allocation3], 1
    %s472 = scalar_lea.sflag [#allocation3], 1
    %473 = vsyncpa %s472, 1
    %474 = vsyncpa [#allocation6], 1
    %s475 = scalar_lea.sflag [#allocation6], 1
    %476 = vsyncpa %s475, 1
    %477 = vsyncpa [#allocation9], 1
    %s478 = scalar_lea.sflag [#allocation9], 1
    %479 = vsyncpa %s478, 1
    %480 = vsyncpa [#allocation4], 1
    %s481 = scalar_lea.sflag [#allocation4], 1
    %482 = vsyncpa %s481, 1
    %483 = vsyncpa [#allocation12], 1
    %s484 = scalar_lea.sflag [#allocation12], 1
    %485 = vsyncpa %s484, 1

</llo_original>
